<compile_context>
chip_gen: v7x
topology: tpu7x:2x2x1
jax: 0.10.0
libtpu: 0.0.40
codegen_flags: <defaults>
</compile_context>

<pallas_src>
import functools

import jax
import jax.numpy as jnp
from jax import lax
from jax.experimental import pallas as pl
from jax.experimental.pallas import tpu as pltpu

_VMEM_LIMIT = 48 * 1024 * 1024
_TM = 1024
_RESNET152_LAYERS = ((64, 3, 1), (128, 8, 2), (256, 36, 2), (512, 3, 2))


def _round_up(x, m):
    return ((x + m - 1) // m) * m


def _matmul_tiles(m):
    tm = min(_TM, m)
    return tm, pl.cdiv(m, tm)


# ------------------------------- kernels -----------------------------------

def _mm_bn_kernel(x_ref, w_ref, scale_ref, shift_ref, o_ref, *, relu):
    # (TM, K) @ (K, Cout) on the MXU, f32 accumulate, fused BN affine (+ReLU).
    acc = jnp.dot(x_ref[...], w_ref[...], preferred_element_type=jnp.float32)
    y = acc * scale_ref[...] + shift_ref[...]
    if relu:
        y = jnp.maximum(y, 0.0)
    o_ref[...] = y.astype(o_ref.dtype)


def _mm_bn_ds_add_relu_kernel(x_ref, w_ref, scale_ref, shift_ref,
                              xd_ref, wd_ref, dscale_ref, dshift_ref, o_ref):
    # conv3 of a transition bottleneck: matmul + BN, downsample 1x1 conv + BN
    # computed in-kernel, residual add + ReLU, all fused.
    y = jnp.dot(x_ref[...], w_ref[...], preferred_element_type=jnp.float32)
    y = y * scale_ref[...] + shift_ref[...]
    idn = jnp.dot(xd_ref[...], wd_ref[...], preferred_element_type=jnp.float32)
    idn = idn * dscale_ref[...] + dshift_ref[...]
    o_ref[...] = jnp.maximum(y + idn, 0.0).astype(o_ref.dtype)


def _bottleneck_kernel(x_ref, w1_ref, s1_ref, b1_ref,
                       w2_ref, s2_ref, b2_ref,
                       w3_ref, s3_ref, b3_ref,
                       kl_ref, kr_ref, o_ref, pad_ref, *, h, w):
    # Fused identity bottleneck block (stride 1, Cin == Cout):
    #   x_ref/o_ref : (1, h*w, C)   w1: (C, P)   w2: (9, P, P)   w3: (P, C)
    #   kl/kr       : (h*w, 1) bf16 keep-masks (0/1) for the left/right conv2 taps
    #   pad_ref     : flattened zero-padded staging buffer for the 3x3 conv.
    m = h * w
    w0 = _round_up(w + 1, 8)                       # sublane-aligned h1 offset
    x2d = x_ref[0]                                 # (m, C) bf16

    # conv1: 1x1 + BN + ReLU  (one dot, M = h*w)
    h1 = jnp.dot(x2d, w1_ref[...], preferred_element_type=jnp.float32)
    h1 = jnp.maximum(h1 * s1_ref[...] + b1_ref[...], 0.0)

    # Stage conv1's output into the zero-padded flattened scratch.
    pad_ref[...] = jnp.zeros_like(pad_ref)
    pad_ref[pl.ds(w0, m), :] = h1.astype(pad_ref.dtype)

    # conv2: 3x3 stride-1 pad-1 + BN + ReLU.  Each tap = one full-M dot; the
    # row padding handles the vertical borders and kl/kr zero the horizontal
    # wrap-around of the flattened layout.
    p = w2_ref.shape[1]
    kl = kl_ref[...]
    kr = kr_ref[...]
    acc = jnp.zeros((m, p), jnp.float32)
    for dy in range(3):
        for dx in range(3):
            win = pad_ref[pl.ds(w0 - (w + 1) + dy * w + dx, m), :]
            if dx == 0:
                win = win * kl
            elif dx == 2:
                win = win * kr
            acc = acc + jnp.dot(win, w2_ref[dy * 3 + dx],
                                preferred_element_type=jnp.float32)
    h2 = jnp.maximum(acc * s2_ref[...] + b2_ref[...], 0.0)

    # conv3: 1x1 + BN + residual + ReLU.
    y = jnp.dot(h2.astype(jnp.bfloat16), w3_ref[...],
                preferred_element_type=jnp.float32)
    y = y * s3_ref[...] + b3_ref[...] + x2d.astype(jnp.float32)
    o_ref[0] = jnp.maximum(y, 0.0).astype(o_ref.dtype)


def _spatial_conv_kernel(x_ref, w_ref, scale_ref, shift_ref, o_ref, *,
                         kh, kw, stride, th, wo, hps, relu):
    # 3x3 (possibly strided) conv over a phase-decomposed padded slab; used only
    # for the 4 transition-block conv2s.
    # x_ref: (1, s*s*hps, wps, Cin)  w_ref: (kh*kw, Cin, Cout)  o_ref: (1, th, wo, Cout)
    t = pl.program_id(1)
    s = stride
    cout = o_ref.shape[3]
    scale = scale_ref[...]
    shift = shift_ref[...]
    for r in range(th):
        row = t * th + r
        acc = jnp.zeros((wo, cout), jnp.float32)
        for dy in range(kh):
            for dx in range(kw):
                ph = (dy % s) * s + (dx % s)
                win = x_ref[0, ph * hps + row + dy // s, pl.ds(dx // s, wo), :]
                acc = acc + jnp.dot(win, w_ref[dy * kw + dx],
                                    preferred_element_type=jnp.float32)
        y = acc * scale + shift
        if relu:
            y = jnp.maximum(y, 0.0)
        o_ref[0, r, :, :] = y.astype(o_ref.dtype)


def _maxpool_kernel(x_ref, o_ref, *, th, wo, hps):
    # 3x3 stride-2 max pool: whole (th, wo, C) slabs, 9 vectorized maxes, 1 store.
    t = pl.program_id(1)
    row0 = t * th
    best = None
    for dy in range(3):
        for dx in range(3):
            ph = (dy % 2) * 2 + (dx % 2)
            v = x_ref[0, pl.ds(ph * hps + row0 + dy // 2, th),
                      pl.ds(dx // 2, wo), :]
            best = v if best is None else jnp.maximum(best, v)
    o_ref[0] = best


def _head_kernel(x_ref, w_ref, b_ref, o_ref):
    # global average pool + fully connected, fused.
    pooled = jnp.mean(x_ref[...].astype(jnp.float32), axis=1)
    o_ref[...] = (jnp.dot(pooled, w_ref[...], preferred_element_type=jnp.float32)
                  + b_ref[...])


# --------------------------- pallas_call wrappers ----------------------------

def _mm_bn_call(x2d, w, scale, shift, *, relu):
    m, k = x2d.shape
    cout = w.shape[1]
    tm, gm = _matmul_tiles(m)
    kern = functools.partial(_mm_bn_kernel, relu=relu)
    return pl.pallas_call(
        kern,
        grid=(gm,),
        in_specs=[pl.BlockSpec((tm, k), lambda i: (i, 0)),
                  pl.BlockSpec((k, cout), lambda i: (0, 0)),
                  pl.BlockSpec((1, cout), lambda i: (0, 0)),
                  pl.BlockSpec((1, cout), lambda i: (0, 0))],
        out_specs=pl.BlockSpec((tm, cout), lambda i: (i, 0)),
        out_shape=jax.ShapeDtypeStruct((m, cout), jnp.bfloat16),
        compiler_params=pltpu.CompilerParams(
            dimension_semantics=("parallel",),
            vmem_limit_bytes=_VMEM_LIMIT),
    )(x2d, w, scale, shift)


@functools.partial(jax.jit, static_argnames=("relu",))
def _conv1x1_bn(x, w, scale, shift, *, relu=True):
    n, h, wd, cin = x.shape
    cout = w.shape[1]
    y = _mm_bn_call(x.reshape(n * h * wd, cin), w, scale, shift, relu=relu)
    return y.reshape(n, h, wd, cout)


@jax.jit
def _stem_conv(x, w, scale, shift):
    # 7x7 stride-2 pad-3 conv + BN + ReLU via a K-packed (dy,dx,cin) matmul (K=147).
    n, h, wd, cin = x.shape
    cout = w.shape[1]
    ho = (h + 6 - 7) // 2 + 1
    wo = (wd + 6 - 7) // 2 + 1
    xp = jnp.pad(x, ((0, 0), (3, 3), (3, 3), (0, 0)))
    cols = []
    for dy in range(7):
        for dx in range(7):
            cols.append(lax.slice(
                xp, (0, dy, dx, 0),
                (n, dy + 2 * (ho - 1) + 1, dx + 2 * (wo - 1) + 1, cin),
                (1, 2, 2, 1)))
    patches = jnp.concatenate(cols, axis=-1)              # (n, ho, wo, 49*cin)
    x2d = patches.reshape(n * ho * wo, 49 * cin)
    y = _mm_bn_call(x2d, w, scale, shift, relu=True)
    return y.reshape(n, ho, wo, cout)


@functools.partial(jax.jit, static_argnames=("stride",))
def _conv1x1_ds_add_relu(out, w3, s3, b3, x, wd_, ds_, db_, *, stride):
    # conv3 + BN + (downsample 1x1 conv + BN on x) + residual add + ReLU, fused.
    if stride != 1:
        x = x[:, ::stride, ::stride, :]
    n, ho, wo, planes = out.shape
    cin = x.shape[3]
    cout = w3.shape[1]
    m = n * ho * wo
    o2d = out.reshape(m, planes)
    x2d = x.reshape(m, cin)
    tm, gm = _matmul_tiles(m)
    y = pl.pallas_call(
        _mm_bn_ds_add_relu_kernel,
        grid=(gm,),
        in_specs=[pl.BlockSpec((tm, planes), lambda i: (i, 0)),
                  pl.BlockSpec((planes, cout), lambda i: (0, 0)),
                  pl.BlockSpec((1, cout), lambda i: (0, 0)),
                  pl.BlockSpec((1, cout), lambda i: (0, 0)),
                  pl.BlockSpec((tm, cin), lambda i: (i, 0)),
                  pl.BlockSpec((cin, cout), lambda i: (0, 0)),
                  pl.BlockSpec((1, cout), lambda i: (0, 0)),
                  pl.BlockSpec((1, cout), lambda i: (0, 0))],
        out_specs=pl.BlockSpec((tm, cout), lambda i: (i, 0)),
        out_shape=jax.ShapeDtypeStruct((m, cout), jnp.bfloat16),
        compiler_params=pltpu.CompilerParams(
            dimension_semantics=("parallel",),
            vmem_limit_bytes=_VMEM_LIMIT),
    )(o2d, w3, s3, b3, x2d, wd_, ds_, db_)
    return y.reshape(n, ho, wo, cout)


@jax.jit
def _bottleneck_block(x, w1, s1, b1, w2, s2, b2, w3, s3, b3):
    # Fused identity bottleneck block (stride 1, no downsample).
    n, h, wd, c = x.shape
    p = w1.shape[1]
    m = h * wd
    x3 = x.reshape(n, m, c)
    col = jnp.arange(m, dtype=jnp.int32) % wd
    keep_l = (col != 0).astype(jnp.bfloat16).reshape(m, 1)
    keep_r = (col != wd - 1).astype(jnp.bfloat16).reshape(m, 1)
    scr_rows = _round_up(wd + 1, 8) + m + wd + 8
    kern = functools.partial(_bottleneck_kernel, h=h, w=wd)
    y = pl.pallas_call(
        kern,
        grid=(n,),
        in_specs=[pl.BlockSpec((1, m, c), lambda b: (b, 0, 0)),
                  pl.BlockSpec((c, p), lambda b: (0, 0)),
                  pl.BlockSpec((1, p), lambda b: (0, 0)),
                  pl.BlockSpec((1, p), lambda b: (0, 0)),
                  pl.BlockSpec((9, p, p), lambda b: (0, 0, 0)),
                  pl.BlockSpec((1, p), lambda b: (0, 0)),
                  pl.BlockSpec((1, p), lambda b: (0, 0)),
                  pl.BlockSpec((p, c), lambda b: (0, 0)),
                  pl.BlockSpec((1, c), lambda b: (0, 0)),
                  pl.BlockSpec((1, c), lambda b: (0, 0)),
                  pl.BlockSpec((m, 1), lambda b: (0, 0)),
                  pl.BlockSpec((m, 1), lambda b: (0, 0))],
        out_specs=pl.BlockSpec((1, m, c), lambda b: (b, 0, 0)),
        out_shape=jax.ShapeDtypeStruct((n, m, c), jnp.bfloat16),
        scratch_shapes=[pltpu.VMEM((scr_rows, p), jnp.bfloat16)],
        compiler_params=pltpu.CompilerParams(
            dimension_semantics=("parallel",),
            vmem_limit_bytes=_VMEM_LIMIT),
    )(x3, w1, s1, b1, w2, s2, b2, w3, s3, b3, keep_l, keep_r)
    return y.reshape(n, h, wd, c)


def _phase_pad(x, kh, kw, stride, pad, n_tiles, th, wo, pad_value):
    # Pad and phase-decompose (space-to-depth along H) so that every (dy, dx)
    # conv offset is a contiguous, stride-1 slice of a single VMEM-resident slab.
    n, h, w, c = x.shape
    s = stride
    hps = max(-(-(h + 2 * pad) // s), n_tiles * th + (kh - 1) // s)
    wps = max(-(-(w + 2 * pad) // s), wo + (kw - 1) // s)
    xp = jnp.pad(x, ((0, 0), (pad, s * hps - h - pad), (pad, s * wps - w - pad),
                     (0, 0)), constant_values=pad_value)
    xp = xp.reshape(n, hps, s, wps, s, c)
    xp = jnp.transpose(xp, (0, 2, 4, 1, 3, 5))       # (n, py, px, i, j, c)
    return xp.reshape(n, s * s * hps, wps, c), hps, wps


@functools.partial(jax.jit, static_argnames=("kh", "kw", "stride", "pad", "relu"))
def _conv_spatial_bn(x, w, scale, shift, *, kh, kw, stride, pad, relu):
    n, h, wd, cin = x.shape
    cout = w.shape[2]
    s = stride
    ho = (h + 2 * pad - kh) // s + 1
    wo = (wd + 2 * pad - kw) // s + 1
    th = min(8, ho)
    n_tiles = pl.cdiv(ho, th)
    xph, hps, wps = _phase_pad(x, kh, kw, s, pad, n_tiles, th, wo, 0.0)
    kern = functools.partial(_spatial_conv_kernel, kh=kh, kw=kw, stride=s,
                             th=th, wo=wo, hps=hps, relu=relu)
    return pl.pallas_call(
        kern,
        grid=(n, n_tiles),
        in_specs=[pl.BlockSpec((1, s * s * hps, wps, cin),
                               lambda b, t: (b, 0, 0, 0)),
                  pl.BlockSpec((kh * kw, cin, cout), lambda b, t: (0, 0, 0)),
                  pl.BlockSpec((1, cout), lambda b, t: (0, 0)),
                  pl.BlockSpec((1, cout), lambda b, t: (0, 0))],
        out_specs=pl.BlockSpec((1, th, wo, cout), lambda b, t: (b, t, 0, 0)),
        out_shape=jax.ShapeDtypeStruct((n, ho, wo, cout), jnp.bfloat16),
        compiler_params=pltpu.CompilerParams(
            dimension_semantics=("parallel", "parallel"),
            vmem_limit_bytes=_VMEM_LIMIT),
    )(xph, w, scale, shift)


@jax.jit
def _maxpool_3x3_s2(x):
    n, h, wd, c = x.shape
    ho = (h + 2 - 3) // 2 + 1
    wo = (wd + 2 - 3) // 2 + 1
    th = min(8, ho)
    n_tiles = pl.cdiv(ho, th)
    pad_value = float(jnp.finfo(jnp.bfloat16).min)
    xph, hps, wps = _phase_pad(x, 3, 3, 2, 1, n_tiles, th, wo, pad_value)
    kern = functools.partial(_maxpool_kernel, th=th, wo=wo, hps=hps)
    return pl.pallas_call(
        kern,
        grid=(n, n_tiles),
        in_specs=[pl.BlockSpec((1, 4 * hps, wps, c), lambda b, t: (b, 0, 0, 0))],
        out_specs=pl.BlockSpec((1, th, wo, c), lambda b, t: (b, t, 0, 0)),
        out_shape=jax.ShapeDtypeStruct((n, ho, wo, c), jnp.bfloat16),
        compiler_params=pltpu.CompilerParams(
            dimension_semantics=("parallel", "parallel"),
            vmem_limit_bytes=_VMEM_LIMIT),
    )(xph)


@jax.jit
def _avgpool_fc(x, w, b):
    n, h, wd, c = x.shape
    x3 = x.reshape(n, h * wd, c)
    n_out = w.shape[1]
    return pl.pallas_call(
        _head_kernel,
        out_shape=jax.ShapeDtypeStruct((n, n_out), jnp.float32),
        compiler_params=pltpu.CompilerParams(vmem_limit_bytes=_VMEM_LIMIT),
    )(x3, w, b)


# --------------------------- parameter construction --------------------------

def _fold_bn(key, cout):
    kg, kb, km, kv = jax.random.split(key, 4)
    gamma = jax.random.uniform(kg, (cout,), jnp.float32, 0.5, 1.5)
    beta = 0.1 * jax.random.normal(kb, (cout,), jnp.float32)
    mean = 0.1 * jax.random.normal(km, (cout,), jnp.float32)
    var = jax.random.uniform(kv, (cout,), jnp.float32, 0.5, 1.5)
    scale = gamma / jnp.sqrt(var + 1e-5)
    shift = beta - mean * scale
    return scale.reshape(1, cout), shift.reshape(1, cout)


def _make_conv_bn(key, cout, cin, kh, kw):
    kconv, kbn = jax.random.split(key)
    fan_in = cin * kh * kw
    w = ((2.0 / fan_in) ** 0.5) * jax.random.normal(
        kconv, (cout, cin, kh, kw), jnp.float32)        # torch layout
    scale, shift = _fold_bn(kbn, cout)
    if kh == 1 and kw == 1:
        w2 = jnp.transpose(w[:, :, 0, 0], (1, 0))        # (Cin, Cout)
        return {"w": w2.astype(jnp.bfloat16), "scale": scale, "shift": shift}
    if kh == 7:                                          # stem: K-packed (dy,dx,cin)
        w7 = jnp.transpose(w, (2, 3, 1, 0)).reshape(kh * kw * cin, cout)
        return {"w": w7.astype(jnp.bfloat16), "scale": scale, "shift": shift}
    w3 = jnp.transpose(w, (2, 3, 1, 0)).reshape(kh * kw, cin, cout)
    return {"w": w3.astype(jnp.bfloat16), "scale": scale, "shift": shift}


def init_resnet152_params(key, outputs_number):
    params = {}
    key, k = jax.random.split(key)
    params["stem"] = _make_conv_bn(k, 64, 3, 7, 7)

    inplanes = 64
    layers = []
    for planes, nblocks, stride in _RESNET152_LAYERS:
        blocks = []
        for b in range(nblocks):
            s = stride if b == 0 else 1
            out_ch = planes * 4
            key, k1, k2, k3 = jax.random.split(key, 4)
            blk = {"conv1": _make_conv_bn(k1, planes, inplanes, 1, 1),
                   "conv2": _make_conv_bn(k2, planes, planes, 3, 3),
                   "conv3": _make_conv_bn(k3, out_ch, planes, 1, 1)}
            if s != 1 or inplanes != out_ch:
                key, kd = jax.random.split(key)
                blk["downsample"] = _make_conv_bn(kd, out_ch, inplanes, 1, 1)
            blocks.append(blk)
            inplanes = out_ch
        layers.append(blocks)
    params["layers"] = layers

    key, kw_, kb_ = jax.random.split(key, 3)
    # torch Linear(2048, outputs_number): y = x @ W.T + b ; store W already transposed
    params["fc_w"] = 0.01 * jax.random.normal(kw_, (2048, outputs_number), jnp.float32)
    params["fc_b"] = 0.01 * jax.random.normal(kb_, (1, outputs_number), jnp.float32)
    return params


# ---------------------------------- forward ----------------------------------

def resnet152_forward(params, x_nchw):
    x = jnp.transpose(x_nchw, (0, 2, 3, 1)).astype(jnp.bfloat16)   # NCHW -> NHWC
    st = params["stem"]
    x = _stem_conv(x, st["w"], st["scale"], st["shift"])
    x = _maxpool_3x3_s2(x)
    for (planes, nblocks, stride), blocks in zip(_RESNET152_LAYERS, params["layers"]):
        for b, blk in enumerate(blocks):
            s = stride if b == 0 else 1
            c1, c2, c3 = blk["conv1"], blk["conv2"], blk["conv3"]
            if "downsample" in blk:
                # Transition block: separate kernels (strided conv2) with the
                # downsample conv fused into the conv3 + add + ReLU kernel.
                d = blk["downsample"]
                out = _conv1x1_bn(x, c1["w"], c1["scale"], c1["shift"], relu=True)
                out = _conv_spatial_bn(out, c2["w"], c2["scale"], c2["shift"],
                                       kh=3, kw=3, stride=s, pad=1, relu=True)
                x = _conv1x1_ds_add_relu(out, c3["w"], c3["scale"], c3["shift"],
                                         x, d["w"], d["scale"], d["shift"],
                                         stride=s)
            else:
                # Identity block: single fused pallas_call, VMEM-resident activations.
                x = _bottleneck_block(x, c1["w"], c1["scale"], c1["shift"],
                                      c2["w"], c2["scale"], c2["shift"],
                                      c3["w"], c3["scale"], c3["shift"])
    return _avgpool_fc(x, params["fc_w"], params["fc_b"])


# ------------------------------------ main ------------------------------------

if __name__ == "__main__":
    outputs_number = 10
    key = jax.random.PRNGKey(0)
    kx, kp = jax.random.split(key)

    # Small-but-valid ResNet input: batch=2, 3 channels, 32x32 spatial.
    x = jax.random.normal(kx, (2, 3, 32, 32), jnp.float32)

    params = init_resnet152_params(kp, outputs_number)

    out = resnet152_forward(params, x)
    out = jax.block_until_ready(out)

    assert out.shape == (2, outputs_number), out.shape
    assert out.dtype == jnp.float32
    assert bool(jnp.all(jnp.isfinite(out)))
    print("KERNEL_OK")
</pallas_src>

<mosaic_0001>
module attributes {stable_mosaic.version = 11 : i64} {
  func.func @_mm_bn_kernel(%arg0: i32, %arg1: memref<512x147xbf16, #tpu.memory_space<vmem>>, %arg2: memref<147x64xbf16, #tpu.memory_space<vmem>>, %arg3: memref<1x64xf32, #tpu.memory_space<vmem>>, %arg4: memref<1x64xf32, #tpu.memory_space<vmem>>, %arg5: memref<512x64xbf16, #tpu.memory_space<vmem>>) attributes {dimension_semantics = [#tpu.dimension_semantics<parallel>], iteration_bounds = array<i64: 1>, scalar_prefetch = 0 : i64, scratch_operands = 0 : i64, tpu.core_type = #tpu.core_type<tc>, window_params = [{transform_indices = @transform_0, window_bounds = array<i64: 512, 147>}, {pipeline_mode = #tpu.pipeline_mode<synchronous>, transform_indices = @transform_1, window_bounds = array<i64: 147, 64>}, {pipeline_mode = #tpu.pipeline_mode<synchronous>, transform_indices = @transform_2, window_bounds = array<i64: 1, 64>}, {pipeline_mode = #tpu.pipeline_mode<synchronous>, transform_indices = @transform_3, window_bounds = array<i64: 1, 64>}, {transform_indices = @transform_4, window_bounds = array<i64: 512, 64>}]} {
    %c0 = arith.constant 0 : index
    %c0_0 = arith.constant 0 : index
    %0 = vector.load %arg1[%c0, %c0_0] : memref<512x147xbf16, #tpu.memory_space<vmem>>, vector<512x147xbf16>
    %c0_1 = arith.constant 0 : index
    %c0_2 = arith.constant 0 : index
    %1 = vector.load %arg2[%c0_1, %c0_2] : memref<147x64xbf16, #tpu.memory_space<vmem>>, vector<147x64xbf16>
    %cst = arith.constant dense<0.000000e+00> : vector<512x64xf32>
    %2 = tpu.matmul %0, %1, %cst {dimension_numbers = #tpu.dot_dimension_numbers<[1], [0], [0], [1], [0, 0, 1, 1], [], []>} : vector<512x147xbf16>, vector<147x64xbf16>, vector<512x64xf32> -> vector<512x64xf32>
    %c0_3 = arith.constant 0 : index
    %c0_4 = arith.constant 0 : index
    %3 = vector.load %arg3[%c0_3, %c0_4] : memref<1x64xf32, #tpu.memory_space<vmem>>, vector<1x64xf32>
    %4 = vector.broadcast %3 : vector<1x64xf32> to vector<512x64xf32>
    %5 = arith.mulf %2, %4 : vector<512x64xf32>
    %c0_5 = arith.constant 0 : index
    %c0_6 = arith.constant 0 : index
    %6 = vector.load %arg4[%c0_5, %c0_6] : memref<1x64xf32, #tpu.memory_space<vmem>>, vector<1x64xf32>
    %7 = vector.broadcast %6 : vector<1x64xf32> to vector<512x64xf32>
    %8 = arith.addf %5, %7 : vector<512x64xf32>
    %cst_7 = arith.constant 0.000000e+00 : f32
    %9 = vector.broadcast %cst_7 : f32 to vector<512x64xf32>
    %10 = arith.maximumf %8, %9 : vector<512x64xf32>
    %11 = arith.truncf %10 : vector<512x64xf32> to vector<512x64xbf16>
    %c0_8 = arith.constant 0 : index
    %c0_9 = arith.constant 0 : index
    %12 = vector.load %arg5[%c0_8, %c0_9] : memref<512x64xbf16, #tpu.memory_space<vmem>>, vector<512x64xbf16>
    tpu.vector_store %arg5[%c0_8, %c0_9], %11 {strides = array<i32>} : memref<512x64xbf16, #tpu.memory_space<vmem>>, vector<512x64xbf16>,
    return
  }
  func.func @transform_0(%arg0: i32) -> (i32, i32) {
    %c0_i32 = arith.constant 0 : i32
    %c0_i32_0 = arith.constant 0 : i32
    return %arg0, %c0_i32 : i32, i32
  }
  func.func @transform_1(%arg0: i32) -> (i32, i32) {
    %c0_i32 = arith.constant 0 : i32
    %c0_i32_0 = arith.constant 0 : i32
    %c0_i32_1 = arith.constant 0 : i32
    return %c0_i32, %c0_i32_0 : i32, i32
  }
  func.func @transform_2(%arg0: i32) -> (i32, i32) {
    %c0_i32 = arith.constant 0 : i32
    %c0_i32_0 = arith.constant 0 : i32
    %c0_i32_1 = arith.constant 0 : i32
    return %c0_i32, %c0_i32_0 : i32, i32
  }
  func.func @transform_3(%arg0: i32) -> (i32, i32) {
    %c0_i32 = arith.constant 0 : i32
    %c0_i32_0 = arith.constant 0 : i32
    %c0_i32_1 = arith.constant 0 : i32
    return %c0_i32, %c0_i32_0 : i32, i32
  }
  func.func @transform_4(%arg0: i32) -> (i32, i32) {
    %c0_i32 = arith.constant 0 : i32
    %c0_i32_0 = arith.constant 0 : i32
    return %arg0, %c0_i32 : i32, i32
  }
}

</mosaic_0001>

<llo_original>
// kernel: _stem_conv.1
$region0: #{_stem_conv.1}
  #allocation0 [shape = 'u32[]', space=smem, size = 0x4, offset = 0x4, fixed_abs, tag = 'smem constant byte address 0x4 - core index']
  #allocation1 [shape = 'u32[144,128]{1,0:T(1,128)}', space=vmem, size = 0x12000, scoped, tag = 'internal scratch']
  %s0 = inlined_call_operand.vmem [shape: bf16[512,147], index: 0, kind: input, shape index: {}]
  %s1 = inlined_call_operand.vmem [shape: bf16[147,64], index: 1, kind: input, shape index: {}]
  %s2 = inlined_call_operand.vmem [shape: f32[1,64], index: 2, kind: input, shape index: {}]
  %s3 = inlined_call_operand.vmem [shape: f32[1,64], index: 3, kind: input, shape index: {}]
  %s4 = inlined_call_operand.hbm [shape: bf16[512,64], index: 4, kind: output, shape index: {}]
  %s5 = sld [smem:[#allocation0]]
  $region26: #{_stem_conv.1} parent=0
    _
  %s7 = ssub.s32 1, %s5
  %s8 = scalar_select 0, %s7, %s5
  $region1: #{_stem_conv.1} parent=0
    #allocation2 [shape = 'u8[131072]{0}', space=vmem, size = 0x20000, scoped, tag = 'output window, operand 0, single buffered']
    #allocation3 [shape = 's32[1]{0}', space=sflag, size = 0x4, scoped, tag = 'scoped memory for _stem_conv.1']
    %9 = vsyncpa [#allocation3], 0
    // Predicated region
    $region2: #{_stem_conv.1} parent=1 // pred_check
      _
    $region3: #{_stem_conv.1} parent=1 // pred_check_branch
      %11 = sbr.rel (0) target = $region5
    $region4: #{_stem_conv.1} parent=1 // pred_region
      _
    $region5: #{_stem_conv.1} parent=1 // pred_fallthru
      _
    // Predicated region
    $region6: #{_stem_conv.1} parent=1 // pred_check
      _
    $region7: #{_stem_conv.1} parent=1 // pred_check_branch
      %13 = sbr.rel (0) target = $region9
    $region8: #{_stem_conv.1} parent=1 // pred_region
      _
    $region9: #{_stem_conv.1} parent=1 // pred_fallthru
      _
    // Predicated region
    $region10: #{_stem_conv.1} parent=1 // pred_check
      _
    $region11: #{_stem_conv.1} parent=1 // pred_check_branch
      %15 = sbr.rel (0) target = $region13
    $region12: #{_stem_conv.1} parent=1 // pred_region
      _
    $region13: #{_stem_conv.1} parent=1 // pred_fallthru
      _
    // Predicated region
    $region14: #{_stem_conv.1} parent=1 // pred_check
      _
    $region15: #{_stem_conv.1} parent=1 // pred_check_branch
      %17 = sbr.rel (0) target = $region17
    $region16: #{_stem_conv.1} parent=1 // pred_region
      _
    $region17: #{_stem_conv.1} parent=1 // pred_fallthru
      _
    %v19 = vld [vmem:[%s0] sm:$0xff]
    %v20 = vld [vmem:[%s0 + $0x8] sm:$0xff]
    %v21 = vld [vmem:[%s0 + $0x10] sm:$0xff]
    %v22 = vld [vmem:[%s0 + $0x18] sm:$0xff]
    %v23 = vld [vmem:[%s0 + $0x20] sm:$0xff]
    %v24 = vld [vmem:[%s0 + $0x28] sm:$0xff]
    %v25 = vld [vmem:[%s0 + $0x30] sm:$0xff]
    %v26 = vld [vmem:[%s0 + $0x38] sm:$0xff]
    %v27 = vld [vmem:[%s0 + $0x40] sm:$0xff]
    %v28 = vld [vmem:[%s0 + $0x48] sm:$0xff]
    %v29 = vld [vmem:[%s0 + $0x50] sm:$0xff]
    %v30 = vld [vmem:[%s0 + $0x58] sm:$0xff]
    %v31 = vld [vmem:[%s0 + $0x60] sm:$0xff]
    %v32 = vld [vmem:[%s0 + $0x68] sm:$0xff]
    %v33 = vld [vmem:[%s0 + $0x70] sm:$0xff]
    %v34 = vld [vmem:[%s0 + $0x78] sm:$0xff]
    %v35 = vld [vmem:[%s0 + $0x80] sm:$0xff]
    %v36 = vld [vmem:[%s0 + $0x88] sm:$0xff]
    %v37 = vld [vmem:[%s0 + $0x90] sm:$0xff]
    %v38 = vld [vmem:[%s0 + $0x98] sm:$0xff]
    %v39 = vld [vmem:[%s0 + $0xa0] sm:$0xff]
    %v40 = vld [vmem:[%s0 + $0xa8] sm:$0xff]
    %v41 = vld [vmem:[%s0 + $0xb0] sm:$0xff]
    %v42 = vld [vmem:[%s0 + $0xb8] sm:$0xff]
    %v43 = vld [vmem:[%s0 + $0xc0] sm:$0xff]
    %v44 = vld [vmem:[%s0 + $0xc8] sm:$0xff]
    %v45 = vld [vmem:[%s0 + $0xd0] sm:$0xff]
    %v46 = vld [vmem:[%s0 + $0xd8] sm:$0xff]
    %v47 = vld [vmem:[%s0 + $0xe0] sm:$0xff]
    %v48 = vld [vmem:[%s0 + $0xe8] sm:$0xff]
    %v49 = vld [vmem:[%s0 + $0xf0] sm:$0xff]
    %v50 = vld [vmem:[%s0 + $0xf8] sm:$0xff]
    %v51 = vld [vmem:[%s0 + $0x100] sm:$0xff]
    %v52 = vld [vmem:[%s0 + $0x108] sm:$0xff]
    %v53 = vld [vmem:[%s0 + $0x110] sm:$0xff]
    %v54 = vld [vmem:[%s0 + $0x118] sm:$0xff]
    %v55 = vld [vmem:[%s0 + $0x120] sm:$0xff]
    %v56 = vld [vmem:[%s0 + $0x128] sm:$0xff]
    %v57 = vld [vmem:[%s0 + $0x130] sm:$0xff]
    %v58 = vld [vmem:[%s0 + $0x138] sm:$0xff]
    %v59 = vld [vmem:[%s0 + $0x140] sm:$0xff]
    %v60 = vld [vmem:[%s0 + $0x148] sm:$0xff]
    %v61 = vld [vmem:[%s0 + $0x150] sm:$0xff]
    %v62 = vld [vmem:[%s0 + $0x158] sm:$0xff]
    %v63 = vld [vmem:[%s0 + $0x160] sm:$0xff]
    %v64 = vld [vmem:[%s0 + $0x168] sm:$0xff]
    %v65 = vld [vmem:[%s0 + $0x170] sm:$0xff]
    %v66 = vld [vmem:[%s0 + $0x178] sm:$0xff]
    %v67 = vld [vmem:[%s0 + $0x180] sm:$0xff]
    %v68 = vld [vmem:[%s0 + $0x188] sm:$0xff]
    %v69 = vld [vmem:[%s0 + $0x190] sm:$0xff]
    %v70 = vld [vmem:[%s0 + $0x198] sm:$0xff]
    %v71 = vld [vmem:[%s0 + $0x1a0] sm:$0xff]
    %v72 = vld [vmem:[%s0 + $0x1a8] sm:$0xff]
    %v73 = vld [vmem:[%s0 + $0x1b0] sm:$0xff]
    %v74 = vld [vmem:[%s0 + $0x1b8] sm:$0xff]
    %v75 = vld [vmem:[%s0 + $0x1c0] sm:$0xff]
    %v76 = vld [vmem:[%s0 + $0x1c8] sm:$0xff]
    %v77 = vld [vmem:[%s0 + $0x1d0] sm:$0xff]
    %v78 = vld [vmem:[%s0 + $0x1d8] sm:$0xff]
    %v79 = vld [vmem:[%s0 + $0x1e0] sm:$0xff]
    %v80 = vld [vmem:[%s0 + $0x1e8] sm:$0xff]
    %v81 = vld [vmem:[%s0 + $0x1f0] sm:$0xff]
    %v82 = vld [vmem:[%s0 + $0x1f8] sm:$0xff]
    %v83 = vld [vmem:[%s1] sm:$0xf]
    %v84 = vld [vmem:[%s1 + $0x4] sm:$0xf]
    %v85 = vld [vmem:[%s1 + $0x8] sm:$0xf]
    %v86 = vld [vmem:[%s1 + $0xc] sm:$0xf]
    %v87 = vld [vmem:[%s1 + $0x10] sm:$0xf]
    %v88 = vld [vmem:[%s1 + $0x14] sm:$0xf]
    %v89 = vld [vmem:[%s1 + $0x18] sm:$0xf]
    %v90 = vld [vmem:[%s1 + $0x1c] sm:$0xf]
    %v91 = vld [vmem:[%s1 + $0x20] sm:$0xf]
    %v92 = vld [vmem:[%s1 + $0x24] sm:$0xf]
    %v93 = vld [vmem:[%s1 + $0x28] sm:$0xf]
    %v94 = vld [vmem:[%s1 + $0x2c] sm:$0xf]
    %v95 = vld [vmem:[%s1 + $0x30] sm:$0xf]
    %v96 = vld [vmem:[%s1 + $0x34] sm:$0xf]
    %v97 = vld [vmem:[%s1 + $0x38] sm:$0xf]
    %v98 = vld [vmem:[%s1 + $0x3c] sm:$0xf]
    %v99 = vld [vmem:[%s1 + $0x40] sm:$0xf]
    %v100 = vld [vmem:[%s1 + $0x44] sm:$0xf]
    %v101 = vld [vmem:[%s1 + $0x48] sm:$0x3]
    %v166 = vunpack.c.l.b16 %v19
    %v167 = vunpack.c.h.b16 %v19
    %v168 = vunpack.c.l.b16 %v20
    %v169 = vunpack.c.h.b16 %v20
    %v170 = vunpack.c.l.b16 %v21
    %v171 = vunpack.c.h.b16 %v21
    %v172 = vunpack.c.l.b16 %v22
    %v173 = vunpack.c.h.b16 %v22
    %v174 = vunpack.c.l.b16 %v23
    %v175 = vunpack.c.h.b16 %v23
    %v176 = vunpack.c.l.b16 %v24
    %v177 = vunpack.c.h.b16 %v24
    %v178 = vunpack.c.l.b16 %v25
    %v179 = vunpack.c.h.b16 %v25
    %v180 = vunpack.c.l.b16 %v26
    %v181 = vunpack.c.h.b16 %v26
    %v182 = vunpack.c.l.b16 %v27
    %v183 = vunpack.c.h.b16 %v27
    %v184 = vunpack.c.l.b16 %v28
    %v185 = vunpack.c.h.b16 %v28
    %v186 = vunpack.c.l.b16 %v29
    %v187 = vunpack.c.h.b16 %v29
    %v188 = vunpack.c.l.b16 %v30
    %v189 = vunpack.c.h.b16 %v30
    %v190 = vunpack.c.l.b16 %v31
    %v191 = vunpack.c.h.b16 %v31
    %v192 = vunpack.c.l.b16 %v32
    %v193 = vunpack.c.h.b16 %v32
    %v194 = vunpack.c.l.b16 %v33
    %v195 = vunpack.c.h.b16 %v33
    %v196 = vunpack.c.l.b16 %v34
    %v197 = vunpack.c.h.b16 %v34
    %v198 = vunpack.c.l.b16 %v35
    %v199 = vunpack.c.h.b16 %v35
    %v200 = vunpack.c.l.b16 %v36
    %v201 = vunpack.c.h.b16 %v36
    %v202 = vunpack.c.l.b16 %v37
    %v203 = vunpack.c.h.b16 %v37
    %v204 = vunpack.c.l.b16 %v38
    %v205 = vunpack.c.h.b16 %v38
    %v206 = vunpack.c.l.b16 %v39
    %v207 = vunpack.c.h.b16 %v39
    %v208 = vunpack.c.l.b16 %v40
    %v209 = vunpack.c.h.b16 %v40
    %v210 = vunpack.c.l.b16 %v41
    %v211 = vunpack.c.h.b16 %v41
    %v212 = vunpack.c.l.b16 %v42
    %v213 = vunpack.c.h.b16 %v42
    %v214 = vunpack.c.l.b16 %v43
    %v215 = vunpack.c.h.b16 %v43
    %v216 = vunpack.c.l.b16 %v44
    %v217 = vunpack.c.h.b16 %v44
    %v218 = vunpack.c.l.b16 %v45
    %v219 = vunpack.c.h.b16 %v45
    %v220 = vunpack.c.l.b16 %v46
    %v221 = vunpack.c.h.b16 %v46
    %v222 = vunpack.c.l.b16 %v47
    %v223 = vunpack.c.h.b16 %v47
    %v224 = vunpack.c.l.b16 %v48
    %v225 = vunpack.c.h.b16 %v48
    %v226 = vunpack.c.l.b16 %v49
    %v227 = vunpack.c.h.b16 %v49
    %v228 = vunpack.c.l.b16 %v50
    %v229 = vunpack.c.h.b16 %v50
    %v230 = vunpack.c.l.b16 %v51
    %v231 = vunpack.c.h.b16 %v51
    %v232 = vunpack.c.l.b16 %v52
    %v233 = vunpack.c.h.b16 %v52
    %v234 = vunpack.c.l.b16 %v53
    %v235 = vunpack.c.h.b16 %v53
    %v236 = vunpack.c.l.b16 %v54
    %v237 = vunpack.c.h.b16 %v54
    %v238 = vunpack.c.l.b16 %v55
    %v239 = vunpack.c.h.b16 %v55
    %v240 = vunpack.c.l.b16 %v56
    %v241 = vunpack.c.h.b16 %v56
    %v242 = vunpack.c.l.b16 %v57
    %v243 = vunpack.c.h.b16 %v57
    %v244 = vunpack.c.l.b16 %v58
    %v245 = vunpack.c.h.b16 %v58
    %v246 = vunpack.c.l.b16 %v59
    %v247 = vunpack.c.h.b16 %v59
    %v248 = vunpack.c.l.b16 %v60
    %v249 = vunpack.c.h.b16 %v60
    %v250 = vunpack.c.l.b16 %v61
    %v251 = vunpack.c.h.b16 %v61
    %v252 = vunpack.c.l.b16 %v62
    %v253 = vunpack.c.h.b16 %v62
    %v254 = vunpack.c.l.b16 %v63
    %v255 = vunpack.c.h.b16 %v63
    %v256 = vunpack.c.l.b16 %v64
    %v257 = vunpack.c.h.b16 %v64
    %v258 = vunpack.c.l.b16 %v65
    %v259 = vunpack.c.h.b16 %v65
    %v260 = vunpack.c.l.b16 %v66
    %v261 = vunpack.c.h.b16 %v66
    %v262 = vunpack.c.l.b16 %v67
    %v263 = vunpack.c.h.b16 %v67
    %v264 = vunpack.c.l.b16 %v68
    %v265 = vunpack.c.h.b16 %v68
    %v266 = vunpack.c.l.b16 %v69
    %v267 = vunpack.c.h.b16 %v69
    %v268 = vunpack.c.l.b16 %v70
    %v269 = vunpack.c.h.b16 %v70
    %v270 = vunpack.c.l.b16 %v71
    %v271 = vunpack.c.h.b16 %v71
    %v272 = vunpack.c.l.b16 %v72
    %v273 = vunpack.c.h.b16 %v72
    %v274 = vunpack.c.l.b16 %v73
    %v275 = vunpack.c.h.b16 %v73
    %v276 = vunpack.c.l.b16 %v74
    %v277 = vunpack.c.h.b16 %v74
    %v278 = vunpack.c.l.b16 %v75
    %v279 = vunpack.c.h.b16 %v75
    %v280 = vunpack.c.l.b16 %v76
    %v281 = vunpack.c.h.b16 %v76
    %v282 = vunpack.c.l.b16 %v77
    %v283 = vunpack.c.h.b16 %v77
    %v284 = vunpack.c.l.b16 %v78
    %v285 = vunpack.c.h.b16 %v78
    %v286 = vunpack.c.l.b16 %v79
    %v287 = vunpack.c.h.b16 %v79
    %v288 = vunpack.c.l.b16 %v80
    %v289 = vunpack.c.h.b16 %v80
    %v290 = vunpack.c.l.b16 %v81
    %v291 = vunpack.c.h.b16 %v81
    %v292 = vunpack.c.l.b16 %v82
    %v293 = vunpack.c.h.b16 %v82
    %v294 = vpack.c.b16 %v168, %v166
    %v295 = vpack.c.b16 %v169, %v167
    %v296 = vpack.c.b16 %v172, %v170
    %v297 = vpack.c.b16 %v173, %v171
    %v298 = vpack.c.b16 %v176, %v174
    %v299 = vpack.c.b16 %v177, %v175
    %v300 = vpack.c.b16 %v180, %v178
    %v301 = vpack.c.b16 %v181, %v179
    %v302 = vpack.c.b16 %v184, %v182
    %v303 = vpack.c.b16 %v185, %v183
    %v304 = vpack.c.b16 %v188, %v186
    %v305 = vpack.c.b16 %v189, %v187
    %v306 = vpack.c.b16 %v192, %v190
    %v307 = vpack.c.b16 %v193, %v191
    %v308 = vpack.c.b16 %v196, %v194
    %v309 = vpack.c.b16 %v197, %v195
    %v310 = vpack.c.b16 %v200, %v198
    %v311 = vpack.c.b16 %v201, %v199
    %v312 = vpack.c.b16 %v204, %v202
    %v313 = vpack.c.b16 %v205, %v203
    %v314 = vpack.c.b16 %v208, %v206
    %v315 = vpack.c.b16 %v209, %v207
    %v316 = vpack.c.b16 %v212, %v210
    %v317 = vpack.c.b16 %v213, %v211
    %v318 = vpack.c.b16 %v216, %v214
    %v319 = vpack.c.b16 %v217, %v215
    %v320 = vpack.c.b16 %v220, %v218
    %v321 = vpack.c.b16 %v221, %v219
    %v322 = vpack.c.b16 %v224, %v222
    %v323 = vpack.c.b16 %v225, %v223
    %v324 = vpack.c.b16 %v228, %v226
    %v325 = vpack.c.b16 %v229, %v227
    %v326 = vpack.c.b16 %v232, %v230
    %v327 = vpack.c.b16 %v233, %v231
    %v328 = vpack.c.b16 %v236, %v234
    %v329 = vpack.c.b16 %v237, %v235
    %v330 = vpack.c.b16 %v240, %v238
    %v331 = vpack.c.b16 %v241, %v239
    %v332 = vpack.c.b16 %v244, %v242
    %v333 = vpack.c.b16 %v245, %v243
    %v334 = vpack.c.b16 %v248, %v246
    %v335 = vpack.c.b16 %v249, %v247
    %v336 = vpack.c.b16 %v252, %v250
    %v337 = vpack.c.b16 %v253, %v251
    %v338 = vpack.c.b16 %v256, %v254
    %v339 = vpack.c.b16 %v257, %v255
    %v340 = vpack.c.b16 %v260, %v258
    %v341 = vpack.c.b16 %v261, %v259
    %v342 = vpack.c.b16 %v264, %v262
    %v343 = vpack.c.b16 %v265, %v263
    %v344 = vpack.c.b16 %v268, %v266
    %v345 = vpack.c.b16 %v269, %v267
    %v346 = vpack.c.b16 %v272, %v270
    %v347 = vpack.c.b16 %v273, %v271
    %v348 = vpack.c.b16 %v276, %v274
    %v349 = vpack.c.b16 %v277, %v275
    %v350 = vpack.c.b16 %v280, %v278
    %v351 = vpack.c.b16 %v281, %v279
    %v352 = vpack.c.b16 %v284, %v282
    %v353 = vpack.c.b16 %v285, %v283
    %v354 = vpack.c.b16 %v288, %v286
    %v355 = vpack.c.b16 %v289, %v287
    %v356 = vpack.c.b16 %v292, %v290
    %v357 = vpack.c.b16 %v293, %v291
    %v409 = vunpack.c.l.b16 %v83
    %v410 = vunpack.c.l.b16 %v84
    %v411 = vunpack.c.l.b16 %v85
    %v412 = vunpack.c.l.b16 %v86
    %v413 = vunpack.c.l.b16 %v87
    %v414 = vunpack.c.l.b16 %v88
    %v415 = vunpack.c.l.b16 %v89
    %v416 = vunpack.c.l.b16 %v90
    %v417 = vunpack.c.l.b16 %v91
    %v418 = vunpack.c.l.b16 %v92
    %v419 = vunpack.c.l.b16 %v93
    %v420 = vunpack.c.l.b16 %v94
    %v421 = vunpack.c.l.b16 %v95
    %v422 = vunpack.c.l.b16 %v96
    %v423 = vunpack.c.l.b16 %v97
    %v424 = vunpack.c.l.b16 %v98
    %v425 = vunpack.c.l.b16 %v99
    %v426 = vunpack.c.l.b16 %v100
    %v427 = vunpack.c.l.b16 %v101
    %v428 = vpack.c.b16 %v410, %v409
    %v429 = vpack.c.b16 %v412, %v411
    %v430 = vpack.c.b16 %v414, %v413
    %v431 = vpack.c.b16 %v416, %v415
    %v432 = vpack.c.b16 %v418, %v417
    %v433 = vpack.c.b16 %v420, %v419
    %v434 = vpack.c.b16 %v422, %v421
    %v435 = vpack.c.b16 %v424, %v423
    %v436 = vpack.c.b16 %v426, %v425
    %v437 = vpack.c.b16 %v427, %v427
    %vm447 = vcmask 154624
    %v449 = vsel %vm447, %v295, 0
    %v452 = vsel %vm447, %v297, 0
    %v455 = vsel %vm447, %v299, 0
    %v458 = vsel %vm447, %v301, 0
    %v461 = vsel %vm447, %v303, 0
    %v464 = vsel %vm447, %v305, 0
    %v467 = vsel %vm447, %v307, 0
    %v470 = vsel %vm447, %v309, 0
    %v473 = vsel %vm447, %v311, 0
    %v476 = vsel %vm447, %v313, 0
    %v479 = vsel %vm447, %v315, 0
    %v482 = vsel %vm447, %v317, 0
    %v485 = vsel %vm447, %v319, 0
    %v488 = vsel %vm447, %v321, 0
    %v491 = vsel %vm447, %v323, 0
    %v494 = vsel %vm447, %v325, 0
    %v497 = vsel %vm447, %v327, 0
    %v500 = vsel %vm447, %v329, 0
    %v503 = vsel %vm447, %v331, 0
    %v506 = vsel %vm447, %v333, 0
    %v509 = vsel %vm447, %v335, 0
    %v512 = vsel %vm447, %v337, 0
    %v515 = vsel %vm447, %v339, 0
    %v518 = vsel %vm447, %v341, 0
    %v521 = vsel %vm447, %v343, 0
    %v524 = vsel %vm447, %v345, 0
    %v527 = vsel %vm447, %v347, 0
    %v530 = vsel %vm447, %v349, 0
    %v533 = vsel %vm447, %v351, 0
    %v536 = vsel %vm447, %v353, 0
    %v539 = vsel %vm447, %v355, 0
    %v542 = vsel %vm447, %v357, 0
    %vm544 = vcmask 1040384
    %vm545 = vcmask 1041408
    %v546 = vsel %vm544, 4294967295, 65535
    %v547 = vsel %vm545, %v546, 0
    %v549 = vand.u32 %v437, %v547
    %551 = vmatprep.subr.bf16.mxu0 0
    %552 = vmatpush1.bf16.msra.mxu0 %v428
    %553 = vmatprep.subr.bf16.mxu0 0
    %554 = vmatpush1.bf16.msra.mxu0 %v429
    %555 = vmatprep.subr.bf16.mxu0 0
    %556 = vmatpush1.bf16.msra.mxu0 %v430
    %557 = vmatprep.subr.bf16.mxu0 0
    %558 = vmatpush1.bf16.msra.mxu0 %v431
    %559 = vmatprep.subr.bf16.mxu0 0
    %560 = vmatpush1.bf16.msra.mxu0 %v432
    %561 = vmatprep.subr.bf16.mxu0 0
    %562 = vmatpush1.bf16.msra.mxu0 %v433
    %563 = vmatprep.subr.bf16.mxu0 0
    %564 = vmatpush1.bf16.msra.mxu0 %v434
    %565 = vmatprep.subr.bf16.mxu0 0
    %566 = vmatpush1.bf16.msra.mxu0 %v435
    %567 = vmatprep.subr.bf16.mxu0 0
    %568 = vmatpush1.bf16.msra.mxu0 %v436
    %569 = vmatprep.subr.bf16.mxu0 0
    %570 = vmatpush1.bf16.msra.mxu0 %v549
    %571 = vmatprep.subr.bf16.mxu0 0
    %572 = vmatpush1.bf16.msra.mxu0 0
    %573 = vmatprep.subr.bf16.mxu0 0
    %574 = vmatpush1.bf16.msra.mxu0 0
    %575 = vmatprep.subr.bf16.mxu0 0
    %576 = vmatpush1.bf16.msra.mxu0 0
    %577 = vmatprep.subr.bf16.mxu0 0
    %578 = vmatpush1.bf16.msra.mxu0 0
    %579 = vmatprep.subr.bf16.mxu0 0
    %580 = vmatpush1.bf16.msra.mxu0 0
    %581 = vmatprep.subr.bf16.mxu0 0
    %582 = vmatpush1.bf16.msra.mxu0 0
    %583 = vmatprep.mubr.bf16.mxu0 %v449
    %584 = vmatmul.mubr.bf16.gmra.mrb[0].mxu0 %v294
    %v585 = vpop.f32.mrb[0].mxu0
    %v586 = vadd.f32 0.0, %v585
    %v587 = vpop.f32.mrb[0].mxu0
    %v588 = vpop.f32.mrb[0].mxu0
    %v589 = vadd.f32 0.0, %v588
    %v590 = vpop.f32.mrb[0].mxu0
    %591 = vmatprep.mubr.bf16.mxu0 %v452
    %592 = vmatmul.mubr.bf16.gmra.mrb[0].mxu0 %v296
    %v593 = vpop.f32.mrb[0].mxu0
    %v594 = vadd.f32 0.0, %v593
    %v595 = vpop.f32.mrb[0].mxu0
    %v596 = vpop.f32.mrb[0].mxu0
    %v597 = vadd.f32 0.0, %v596
    %v598 = vpop.f32.mrb[0].mxu0
    %599 = vmatprep.mubr.bf16.mxu0 %v455
    %600 = vmatmul.mubr.bf16.gmra.mrb[0].mxu0 %v298
    %v601 = vpop.f32.mrb[0].mxu0
    %v602 = vadd.f32 0.0, %v601
    %v603 = vpop.f32.mrb[0].mxu0
    %v604 = vpop.f32.mrb[0].mxu0
    %v605 = vadd.f32 0.0, %v604
    %v606 = vpop.f32.mrb[0].mxu0
    %607 = vmatprep.mubr.bf16.mxu0 %v458
    %608 = vmatmul.mubr.bf16.gmra.mrb[0].mxu0 %v300
    %v609 = vpop.f32.mrb[0].mxu0
    %v610 = vadd.f32 0.0, %v609
    %v611 = vpop.f32.mrb[0].mxu0
    %v612 = vpop.f32.mrb[0].mxu0
    %v613 = vadd.f32 0.0, %v612
    %v614 = vpop.f32.mrb[0].mxu0
    %615 = vmatprep.mubr.bf16.mxu0 %v461
    %616 = vmatmul.mubr.bf16.gmra.mrb[0].mxu0 %v302
    %v617 = vpop.f32.mrb[0].mxu0
    %v618 = vadd.f32 0.0, %v617
    %v619 = vpop.f32.mrb[0].mxu0
    %v620 = vpop.f32.mrb[0].mxu0
    %v621 = vadd.f32 0.0, %v620
    %v622 = vpop.f32.mrb[0].mxu0
    %623 = vmatprep.mubr.bf16.mxu0 %v464
    %624 = vmatmul.mubr.bf16.gmra.mrb[0].mxu0 %v304
    %v625 = vpop.f32.mrb[0].mxu0
    %v626 = vadd.f32 0.0, %v625
    %v627 = vpop.f32.mrb[0].mxu0
    %v628 = vpop.f32.mrb[0].mxu0
    %v629 = vadd.f32 0.0, %v628
    %v630 = vpop.f32.mrb[0].mxu0
    %631 = vmatprep.mubr.bf16.mxu0 %v467
    %632 = vmatmul.mubr.bf16.gmra.mrb[0].mxu0 %v306
    %v633 = vpop.f32.mrb[0].mxu0
    %v634 = vadd.f32 0.0, %v633
    %v635 = vpop.f32.mrb[0].mxu0
    %v636 = vpop.f32.mrb[0].mxu0
    %v637 = vadd.f32 0.0, %v636
    %v638 = vpop.f32.mrb[0].mxu0
    %639 = vmatprep.mubr.bf16.mxu0 %v470
    %640 = vmatmul.mubr.bf16.gmra.mrb[0].mxu0 %v308
    %v641 = vpop.f32.mrb[0].mxu0
    %v642 = vadd.f32 0.0, %v641
    %v643 = vpop.f32.mrb[0].mxu0
    %v644 = vpop.f32.mrb[0].mxu0
    %v645 = vadd.f32 0.0, %v644
    %v646 = vpop.f32.mrb[0].mxu0
    %647 = vmatprep.mubr.bf16.mxu0 %v473
    %648 = vmatmul.mubr.bf16.gmra.mrb[0].mxu0 %v310
    %v649 = vpop.f32.mrb[0].mxu0
    %v650 = vadd.f32 0.0, %v649
    %v651 = vpop.f32.mrb[0].mxu0
    %v652 = vpop.f32.mrb[0].mxu0
    %v653 = vadd.f32 0.0, %v652
    %v654 = vpop.f32.mrb[0].mxu0
    %655 = vmatprep.mubr.bf16.mxu0 %v476
    %656 = vmatmul.mubr.bf16.gmra.mrb[0].mxu0 %v312
    %v657 = vpop.f32.mrb[0].mxu0
    %v658 = vadd.f32 0.0, %v657
    %v659 = vpop.f32.mrb[0].mxu0
    %v660 = vpop.f32.mrb[0].mxu0
    %v661 = vadd.f32 0.0, %v660
    %v662 = vpop.f32.mrb[0].mxu0
    %663 = vmatprep.mubr.bf16.mxu0 %v479
    %664 = vmatmul.mubr.bf16.gmra.mrb[0].mxu0 %v314
    %v665 = vpop.f32.mrb[0].mxu0
    %v666 = vadd.f32 0.0, %v665
    %v667 = vpop.f32.mrb[0].mxu0
    %v668 = vpop.f32.mrb[0].mxu0
    %v669 = vadd.f32 0.0, %v668
    %v670 = vpop.f32.mrb[0].mxu0
    %671 = vmatprep.mubr.bf16.mxu0 %v482
    %672 = vmatmul.mubr.bf16.gmra.mrb[0].mxu0 %v316
    %v673 = vpop.f32.mrb[0].mxu0
    %v674 = vadd.f32 0.0, %v673
    %v675 = vpop.f32.mrb[0].mxu0
    %v676 = vpop.f32.mrb[0].mxu0
    %v677 = vadd.f32 0.0, %v676
    %v678 = vpop.f32.mrb[0].mxu0
    %679 = vmatprep.mubr.bf16.mxu0 %v485
    %680 = vmatmul.mubr.bf16.gmra.mrb[0].mxu0 %v318
    %v681 = vpop.f32.mrb[0].mxu0
    %v682 = vadd.f32 0.0, %v681
    %v683 = vpop.f32.mrb[0].mxu0
    %v684 = vpop.f32.mrb[0].mxu0
    %v685 = vadd.f32 0.0, %v684
    %v686 = vpop.f32.mrb[0].mxu0
    %687 = vmatprep.mubr.bf16.mxu0 %v488
    %688 = vmatmul.mubr.bf16.gmra.mrb[0].mxu0 %v320
    %v689 = vpop.f32.mrb[0].mxu0
    %v690 = vadd.f32 0.0, %v689
    %v691 = vpop.f32.mrb[0].mxu0
    %v692 = vpop.f32.mrb[0].mxu0
    %v693 = vadd.f32 0.0, %v692
    %v694 = vpop.f32.mrb[0].mxu0
    %695 = vmatprep.mubr.bf16.mxu0 %v491
    %696 = vmatmul.mubr.bf16.gmra.mrb[0].mxu0 %v322
    %v697 = vpop.f32.mrb[0].mxu0
    %v698 = vadd.f32 0.0, %v697
    %v699 = vpop.f32.mrb[0].mxu0
    %v700 = vpop.f32.mrb[0].mxu0
    %v701 = vadd.f32 0.0, %v700
    %v702 = vpop.f32.mrb[0].mxu0
    %703 = vmatprep.mubr.bf16.mxu0 %v494
    %704 = vmatmul.mubr.bf16.gmra.mrb[0].mxu0 %v324
    %v705 = vpop.f32.mrb[0].mxu0
    %v706 = vadd.f32 0.0, %v705
    %v707 = vpop.f32.mrb[0].mxu0
    %v708 = vpop.f32.mrb[0].mxu0
    %v709 = vadd.f32 0.0, %v708
    %v710 = vpop.f32.mrb[0].mxu0
    %711 = vmatprep.mubr.bf16.mxu0 %v497
    %712 = vmatmul.mubr.bf16.gmra.mrb[0].mxu0 %v326
    %v713 = vpop.f32.mrb[0].mxu0
    %v714 = vadd.f32 0.0, %v713
    %v715 = vpop.f32.mrb[0].mxu0
    %v716 = vpop.f32.mrb[0].mxu0
    %v717 = vadd.f32 0.0, %v716
    %v718 = vpop.f32.mrb[0].mxu0
    %719 = vmatprep.mubr.bf16.mxu0 %v500
    %720 = vmatmul.mubr.bf16.gmra.mrb[0].mxu0 %v328
    %v721 = vpop.f32.mrb[0].mxu0
    %v722 = vadd.f32 0.0, %v721
    %v723 = vpop.f32.mrb[0].mxu0
    %v724 = vpop.f32.mrb[0].mxu0
    %v725 = vadd.f32 0.0, %v724
    %v726 = vpop.f32.mrb[0].mxu0
    %727 = vmatprep.mubr.bf16.mxu0 %v503
    %728 = vmatmul.mubr.bf16.gmra.mrb[0].mxu0 %v330
    %v729 = vpop.f32.mrb[0].mxu0
    %v730 = vadd.f32 0.0, %v729
    %v731 = vpop.f32.mrb[0].mxu0
    %v732 = vpop.f32.mrb[0].mxu0
    %v733 = vadd.f32 0.0, %v732
    %v734 = vpop.f32.mrb[0].mxu0
    %735 = vmatprep.mubr.bf16.mxu0 %v506
    %736 = vmatmul.mubr.bf16.gmra.mrb[0].mxu0 %v332
    %v737 = vpop.f32.mrb[0].mxu0
    %v738 = vadd.f32 0.0, %v737
    %v739 = vpop.f32.mrb[0].mxu0
    %v740 = vpop.f32.mrb[0].mxu0
    %v741 = vadd.f32 0.0, %v740
    %v742 = vpop.f32.mrb[0].mxu0
    %743 = vmatprep.mubr.bf16.mxu0 %v509
    %744 = vmatmul.mubr.bf16.gmra.mrb[0].mxu0 %v334
    %v745 = vpop.f32.mrb[0].mxu0
    %v746 = vadd.f32 0.0, %v745
    %v747 = vpop.f32.mrb[0].mxu0
    %v748 = vpop.f32.mrb[0].mxu0
    %v749 = vadd.f32 0.0, %v748
    %v750 = vpop.f32.mrb[0].mxu0
    %751 = vmatprep.mubr.bf16.mxu0 %v512
    %752 = vmatmul.mubr.bf16.gmra.mrb[0].mxu0 %v336
    %v753 = vpop.f32.mrb[0].mxu0
    %v754 = vadd.f32 0.0, %v753
    %v755 = vpop.f32.mrb[0].mxu0
    %v756 = vpop.f32.mrb[0].mxu0
    %v757 = vadd.f32 0.0, %v756
    %v758 = vpop.f32.mrb[0].mxu0
    %759 = vmatprep.mubr.bf16.mxu0 %v515
    %760 = vmatmul.mubr.bf16.gmra.mrb[0].mxu0 %v338
    %v761 = vpop.f32.mrb[0].mxu0
    %v762 = vadd.f32 0.0, %v761
    %v763 = vpop.f32.mrb[0].mxu0
    %v764 = vpop.f32.mrb[0].mxu0
    %v765 = vadd.f32 0.0, %v764
    %v766 = vpop.f32.mrb[0].mxu0
    %767 = vmatprep.mubr.bf16.mxu0 %v518
    %768 = vmatmul.mubr.bf16.gmra.mrb[0].mxu0 %v340
    %v769 = vpop.f32.mrb[0].mxu0
    %v770 = vadd.f32 0.0, %v769
    %v771 = vpop.f32.mrb[0].mxu0
    %v772 = vpop.f32.mrb[0].mxu0
    %v773 = vadd.f32 0.0, %v772
    %v774 = vpop.f32.mrb[0].mxu0
    %775 = vmatprep.mubr.bf16.mxu0 %v521
    %776 = vmatmul.mubr.bf16.gmra.mrb[0].mxu0 %v342
    %v777 = vpop.f32.mrb[0].mxu0
    %v778 = vadd.f32 0.0, %v777
    %v779 = vpop.f32.mrb[0].mxu0
    %v780 = vpop.f32.mrb[0].mxu0
    %v781 = vadd.f32 0.0, %v780
    %v782 = vpop.f32.mrb[0].mxu0
    %783 = vmatprep.mubr.bf16.mxu0 %v524
    %784 = vmatmul.mubr.bf16.gmra.mrb[0].mxu0 %v344
    %v785 = vpop.f32.mrb[0].mxu0
    %v786 = vadd.f32 0.0, %v785
    %v787 = vpop.f32.mrb[0].mxu0
    %v788 = vpop.f32.mrb[0].mxu0
    %v789 = vadd.f32 0.0, %v788
    %v790 = vpop.f32.mrb[0].mxu0
    %791 = vmatprep.mubr.bf16.mxu0 %v527
    %792 = vmatmul.mubr.bf16.gmra.mrb[0].mxu0 %v346
    %v793 = vpop.f32.mrb[0].mxu0
    %v794 = vadd.f32 0.0, %v793
    %v795 = vpop.f32.mrb[0].mxu0
    %v796 = vpop.f32.mrb[0].mxu0
    %v797 = vadd.f32 0.0, %v796
    %v798 = vpop.f32.mrb[0].mxu0
    %799 = vmatprep.mubr.bf16.mxu0 %v530
    %800 = vmatmul.mubr.bf16.gmra.mrb[0].mxu0 %v348
    %v801 = vpop.f32.mrb[0].mxu0
    %v802 = vadd.f32 0.0, %v801
    %v803 = vpop.f32.mrb[0].mxu0
    %v804 = vpop.f32.mrb[0].mxu0
    %v805 = vadd.f32 0.0, %v804
    %v806 = vpop.f32.mrb[0].mxu0
    %807 = vmatprep.mubr.bf16.mxu0 %v533
    %808 = vmatmul.mubr.bf16.gmra.mrb[0].mxu0 %v350
    %v809 = vpop.f32.mrb[0].mxu0
    %v810 = vadd.f32 0.0, %v809
    %v811 = vpop.f32.mrb[0].mxu0
    %v812 = vpop.f32.mrb[0].mxu0
    %v813 = vadd.f32 0.0, %v812
    %v814 = vpop.f32.mrb[0].mxu0
    %815 = vmatprep.mubr.bf16.mxu0 %v536
    %816 = vmatmul.mubr.bf16.gmra.mrb[0].mxu0 %v352
    %v817 = vpop.f32.mrb[0].mxu0
    %v818 = vadd.f32 0.0, %v817
    %v819 = vpop.f32.mrb[0].mxu0
    %v820 = vpop.f32.mrb[0].mxu0
    %v821 = vadd.f32 0.0, %v820
    %v822 = vpop.f32.mrb[0].mxu0
    %823 = vmatprep.mubr.bf16.mxu0 %v539
    %824 = vmatmul.mubr.bf16.gmra.mrb[0].mxu0 %v354
    %v825 = vpop.f32.mrb[0].mxu0
    %v826 = vadd.f32 0.0, %v825
    %v827 = vpop.f32.mrb[0].mxu0
    %v828 = vpop.f32.mrb[0].mxu0
    %v829 = vadd.f32 0.0, %v828
    %v830 = vpop.f32.mrb[0].mxu0
    %831 = vmatprep.mubr.bf16.mxu0 %v542
    %832 = vmatmul.mubr.bf16.gmra.mrb[0].mxu0 %v356
    %v833 = vpop.f32.mrb[0].mxu0
    %v834 = vadd.f32 0.0, %v833
    %v835 = vpop.f32.mrb[0].mxu0
    %v836 = vpop.f32.mrb[0].mxu0
    %v837 = vadd.f32 0.0, %v836
    %v838 = vpop.f32.mrb[0].mxu0
    %839 = vdwg.mxu0
    %v840 = vld [vmem:[%s2] sm:$0x1]
    %v842 = vlaneseq
    %v843 = vshrl.u32 %v842, 7
    %v844 = vsub.s32 0, %v843
    %v845 = vrot.slane %v840, %v844
    %v847 = vmul.f32 %v586, %v845
    %v848 = vmul.f32 %v589, %v845
    %v849 = vmul.f32 %v594, %v845
    %v850 = vmul.f32 %v597, %v845
    %v851 = vmul.f32 %v602, %v845
    %v852 = vmul.f32 %v605, %v845
    %v853 = vmul.f32 %v610, %v845
    %v854 = vmul.f32 %v613, %v845
    %v855 = vmul.f32 %v618, %v845
    %v856 = vmul.f32 %v621, %v845
    %v857 = vmul.f32 %v626, %v845
    %v858 = vmul.f32 %v629, %v845
    %v859 = vmul.f32 %v634, %v845
    %v860 = vmul.f32 %v637, %v845
    %v861 = vmul.f32 %v642, %v845
    %v862 = vmul.f32 %v645, %v845
    %v863 = vmul.f32 %v650, %v845
    %v864 = vmul.f32 %v653, %v845
    %v865 = vmul.f32 %v658, %v845
    %v866 = vmul.f32 %v661, %v845
    %v867 = vmul.f32 %v666, %v845
    %v868 = vmul.f32 %v669, %v845
    %v869 = vmul.f32 %v674, %v845
    %v870 = vmul.f32 %v677, %v845
    %v871 = vmul.f32 %v682, %v845
    %v872 = vmul.f32 %v685, %v845
    %v873 = vmul.f32 %v690, %v845
    %v874 = vmul.f32 %v693, %v845
    %v875 = vmul.f32 %v698, %v845
    %v876 = vmul.f32 %v701, %v845
    %v877 = vmul.f32 %v706, %v845
    %v878 = vmul.f32 %v709, %v845
    %v879 = vmul.f32 %v714, %v845
    %v880 = vmul.f32 %v717, %v845
    %v881 = vmul.f32 %v722, %v845
    %v882 = vmul.f32 %v725, %v845
    %v883 = vmul.f32 %v730, %v845
    %v884 = vmul.f32 %v733, %v845
    %v885 = vmul.f32 %v738, %v845
    %v886 = vmul.f32 %v741, %v845
    %v887 = vmul.f32 %v746, %v845
    %v888 = vmul.f32 %v749, %v845
    %v889 = vmul.f32 %v754, %v845
    %v890 = vmul.f32 %v757, %v845
    %v891 = vmul.f32 %v762, %v845
    %v892 = vmul.f32 %v765, %v845
    %v893 = vmul.f32 %v770, %v845
    %v894 = vmul.f32 %v773, %v845
    %v895 = vmul.f32 %v778, %v845
    %v896 = vmul.f32 %v781, %v845
    %v897 = vmul.f32 %v786, %v845
    %v898 = vmul.f32 %v789, %v845
    %v899 = vmul.f32 %v794, %v845
    %v900 = vmul.f32 %v797, %v845
    %v901 = vmul.f32 %v802, %v845
    %v902 = vmul.f32 %v805, %v845
    %v903 = vmul.f32 %v810, %v845
    %v904 = vmul.f32 %v813, %v845
    %v905 = vmul.f32 %v818, %v845
    %v906 = vmul.f32 %v821, %v845
    %v907 = vmul.f32 %v826, %v845
    %v908 = vmul.f32 %v829, %v845
    %v909 = vmul.f32 %v834, %v845
    %v910 = vmul.f32 %v837, %v845
    %v911 = vld [vmem:[%s3] sm:$0x1]
    %v913 = vlaneseq
    %v914 = vshrl.u32 %v913, 7
    %v915 = vsub.s32 0, %v914
    %v916 = vrot.slane %v911, %v915
    %v918 = vadd.f32 %v847, %v916
    %v919 = vadd.f32 %v848, %v916
    %v920 = vadd.f32 %v849, %v916
    %v921 = vadd.f32 %v850, %v916
    %v922 = vadd.f32 %v851, %v916
    %v923 = vadd.f32 %v852, %v916
    %v924 = vadd.f32 %v853, %v916
    %v925 = vadd.f32 %v854, %v916
    %v926 = vadd.f32 %v855, %v916
    %v927 = vadd.f32 %v856, %v916
    %v928 = vadd.f32 %v857, %v916
    %v929 = vadd.f32 %v858, %v916
    %v930 = vadd.f32 %v859, %v916
    %v931 = vadd.f32 %v860, %v916
    %v932 = vadd.f32 %v861, %v916
    %v933 = vadd.f32 %v862, %v916
    %v934 = vadd.f32 %v863, %v916
    %v935 = vadd.f32 %v864, %v916
    %v936 = vadd.f32 %v865, %v916
    %v937 = vadd.f32 %v866, %v916
    %v938 = vadd.f32 %v867, %v916
    %v939 = vadd.f32 %v868, %v916
    %v940 = vadd.f32 %v869, %v916
    %v941 = vadd.f32 %v870, %v916
    %v942 = vadd.f32 %v871, %v916
    %v943 = vadd.f32 %v872, %v916
    %v944 = vadd.f32 %v873, %v916
    %v945 = vadd.f32 %v874, %v916
    %v946 = vadd.f32 %v875, %v916
    %v947 = vadd.f32 %v876, %v916
    %v948 = vadd.f32 %v877, %v916
    %v949 = vadd.f32 %v878, %v916
    %v950 = vadd.f32 %v879, %v916
    %v951 = vadd.f32 %v880, %v916
    %v952 = vadd.f32 %v881, %v916
    %v953 = vadd.f32 %v882, %v916
    %v954 = vadd.f32 %v883, %v916
    %v955 = vadd.f32 %v884, %v916
    %v956 = vadd.f32 %v885, %v916
    %v957 = vadd.f32 %v886, %v916
    %v958 = vadd.f32 %v887, %v916
    %v959 = vadd.f32 %v888, %v916
    %v960 = vadd.f32 %v889, %v916
    %v961 = vadd.f32 %v890, %v916
    %v962 = vadd.f32 %v891, %v916
    %v963 = vadd.f32 %v892, %v916
    %v964 = vadd.f32 %v893, %v916
    %v965 = vadd.f32 %v894, %v916
    %v966 = vadd.f32 %v895, %v916
    %v967 = vadd.f32 %v896, %v916
    %v968 = vadd.f32 %v897, %v916
    %v969 = vadd.f32 %v898, %v916
    %v970 = vadd.f32 %v899, %v916
    %v971 = vadd.f32 %v900, %v916
    %v972 = vadd.f32 %v901, %v916
    %v973 = vadd.f32 %v902, %v916
    %v974 = vadd.f32 %v903, %v916
    %v975 = vadd.f32 %v904, %v916
    %v976 = vadd.f32 %v905, %v916
    %v977 = vadd.f32 %v906, %v916
    %v978 = vadd.f32 %v907, %v916
    %v979 = vadd.f32 %v908, %v916
    %v980 = vadd.f32 %v909, %v916
    %v981 = vadd.f32 %v910, %v916
    %v982 = vmax.f32 %v918, 0.0
    %v983 = vmax.f32 %v919, 0.0
    %v984 = vmax.f32 %v920, 0.0
    %v985 = vmax.f32 %v921, 0.0
    %v986 = vmax.f32 %v922, 0.0
    %v987 = vmax.f32 %v923, 0.0
    %v988 = vmax.f32 %v924, 0.0
    %v989 = vmax.f32 %v925, 0.0
    %v990 = vmax.f32 %v926, 0.0
    %v991 = vmax.f32 %v927, 0.0
    %v992 = vmax.f32 %v928, 0.0
    %v993 = vmax.f32 %v929, 0.0
    %v994 = vmax.f32 %v930, 0.0
    %v995 = vmax.f32 %v931, 0.0
    %v996 = vmax.f32 %v932, 0.0
    %v997 = vmax.f32 %v933, 0.0
    %v998 = vmax.f32 %v934, 0.0
    %v999 = vmax.f32 %v935, 0.0
    %v1000 = vmax.f32 %v936, 0.0
    %v1001 = vmax.f32 %v937, 0.0
    %v1002 = vmax.f32 %v938, 0.0
    %v1003 = vmax.f32 %v939, 0.0
    %v1004 = vmax.f32 %v940, 0.0
    %v1005 = vmax.f32 %v941, 0.0
    %v1006 = vmax.f32 %v942, 0.0
    %v1007 = vmax.f32 %v943, 0.0
    %v1008 = vmax.f32 %v944, 0.0
    %v1009 = vmax.f32 %v945, 0.0
    %v1010 = vmax.f32 %v946, 0.0
    %v1011 = vmax.f32 %v947, 0.0
    %v1012 = vmax.f32 %v948, 0.0
    %v1013 = vmax.f32 %v949, 0.0
    %v1014 = vmax.f32 %v950, 0.0
    %v1015 = vmax.f32 %v951, 0.0
    %v1016 = vmax.f32 %v952, 0.0
    %v1017 = vmax.f32 %v953, 0.0
    %v1018 = vmax.f32 %v954, 0.0
    %v1019 = vmax.f32 %v955, 0.0
    %v1020 = vmax.f32 %v956, 0.0
    %v1021 = vmax.f32 %v957, 0.0
    %v1022 = vmax.f32 %v958, 0.0
    %v1023 = vmax.f32 %v959, 0.0
    %v1024 = vmax.f32 %v960, 0.0
    %v1025 = vmax.f32 %v961, 0.0
    %v1026 = vmax.f32 %v962, 0.0
    %v1027 = vmax.f32 %v963, 0.0
    %v1028 = vmax.f32 %v964, 0.0
    %v1029 = vmax.f32 %v965, 0.0
    %v1030 = vmax.f32 %v966, 0.0
    %v1031 = vmax.f32 %v967, 0.0
    %v1032 = vmax.f32 %v968, 0.0
    %v1033 = vmax.f32 %v969, 0.0
    %v1034 = vmax.f32 %v970, 0.0
    %v1035 = vmax.f32 %v971, 0.0
    %v1036 = vmax.f32 %v972, 0.0
    %v1037 = vmax.f32 %v973, 0.0
    %v1038 = vmax.f32 %v974, 0.0
    %v1039 = vmax.f32 %v975, 0.0
    %v1040 = vmax.f32 %v976, 0.0
    %v1041 = vmax.f32 %v977, 0.0
    %v1042 = vmax.f32 %v978, 0.0
    %v1043 = vmax.f32 %v979, 0.0
    %v1044 = vmax.f32 %v980, 0.0
    %v1045 = vmax.f32 %v981, 0.0
    %v1046 = vpack.c.bf16 %v983, %v982
    %v1047 = vpack.c.bf16 %v985, %v984
    %v1048 = vpack.c.bf16 %v987, %v986
    %v1049 = vpack.c.bf16 %v989, %v988
    %v1050 = vpack.c.bf16 %v991, %v990
    %v1051 = vpack.c.bf16 %v993, %v992
    %v1052 = vpack.c.bf16 %v995, %v994
    %v1053 = vpack.c.bf16 %v997, %v996
    %v1054 = vpack.c.bf16 %v999, %v998
    %v1055 = vpack.c.bf16 %v1001, %v1000
    %v1056 = vpack.c.bf16 %v1003, %v1002
    %v1057 = vpack.c.bf16 %v1005, %v1004
    %v1058 = vpack.c.bf16 %v1007, %v1006
    %v1059 = vpack.c.bf16 %v1009, %v1008
    %v1060 = vpack.c.bf16 %v1011, %v1010
    %v1061 = vpack.c.bf16 %v1013, %v1012
    %v1062 = vpack.c.bf16 %v1015, %v1014
    %v1063 = vpack.c.bf16 %v1017, %v1016
    %v1064 = vpack.c.bf16 %v1019, %v1018
    %v1065 = vpack.c.bf16 %v1021, %v1020
    %v1066 = vpack.c.bf16 %v1023, %v1022
    %v1067 = vpack.c.bf16 %v1025, %v1024
    %v1068 = vpack.c.bf16 %v1027, %v1026
    %v1069 = vpack.c.bf16 %v1029, %v1028
    %v1070 = vpack.c.bf16 %v1031, %v1030
    %v1071 = vpack.c.bf16 %v1033, %v1032
    %v1072 = vpack.c.bf16 %v1035, %v1034
    %v1073 = vpack.c.bf16 %v1037, %v1036
    %v1074 = vpack.c.bf16 %v1039, %v1038
    %v1075 = vpack.c.bf16 %v1041, %v1040
    %v1076 = vpack.c.bf16 %v1043, %v1042
    %v1077 = vpack.c.bf16 %v1045, %v1044
    %v1110 = vunpack.c.l.b16 %v1046
    %v1111 = vunpack.c.h.b16 %v1046
    %v1112 = vunpack.c.l.b16 %v1047
    %v1113 = vunpack.c.h.b16 %v1047
    %v1114 = vunpack.c.l.b16 %v1048
    %v1115 = vunpack.c.h.b16 %v1048
    %v1116 = vunpack.c.l.b16 %v1049
    %v1117 = vunpack.c.h.b16 %v1049
    %v1118 = vunpack.c.l.b16 %v1050
    %v1119 = vunpack.c.h.b16 %v1050
    %v1120 = vunpack.c.l.b16 %v1051
    %v1121 = vunpack.c.h.b16 %v1051
    %v1122 = vunpack.c.l.b16 %v1052
    %v1123 = vunpack.c.h.b16 %v1052
    %v1124 = vunpack.c.l.b16 %v1053
    %v1125 = vunpack.c.h.b16 %v1053
    %v1126 = vunpack.c.l.b16 %v1054
    %v1127 = vunpack.c.h.b16 %v1054
    %v1128 = vunpack.c.l.b16 %v1055
    %v1129 = vunpack.c.h.b16 %v1055
    %v1130 = vunpack.c.l.b16 %v1056
    %v1131 = vunpack.c.h.b16 %v1056
    %v1132 = vunpack.c.l.b16 %v1057
    %v1133 = vunpack.c.h.b16 %v1057
    %v1134 = vunpack.c.l.b16 %v1058
    %v1135 = vunpack.c.h.b16 %v1058
    %v1136 = vunpack.c.l.b16 %v1059
    %v1137 = vunpack.c.h.b16 %v1059
    %v1138 = vunpack.c.l.b16 %v1060
    %v1139 = vunpack.c.h.b16 %v1060
    %v1140 = vunpack.c.l.b16 %v1061
    %v1141 = vunpack.c.h.b16 %v1061
    %v1142 = vunpack.c.l.b16 %v1062
    %v1143 = vunpack.c.h.b16 %v1062
    %v1144 = vunpack.c.l.b16 %v1063
    %v1145 = vunpack.c.h.b16 %v1063
    %v1146 = vunpack.c.l.b16 %v1064
    %v1147 = vunpack.c.h.b16 %v1064
    %v1148 = vunpack.c.l.b16 %v1065
    %v1149 = vunpack.c.h.b16 %v1065
    %v1150 = vunpack.c.l.b16 %v1066
    %v1151 = vunpack.c.h.b16 %v1066
    %v1152 = vunpack.c.l.b16 %v1067
    %v1153 = vunpack.c.h.b16 %v1067
    %v1154 = vunpack.c.l.b16 %v1068
    %v1155 = vunpack.c.h.b16 %v1068
    %v1156 = vunpack.c.l.b16 %v1069
    %v1157 = vunpack.c.h.b16 %v1069
    %v1158 = vunpack.c.l.b16 %v1070
    %v1159 = vunpack.c.h.b16 %v1070
    %v1160 = vunpack.c.l.b16 %v1071
    %v1161 = vunpack.c.h.b16 %v1071
    %v1162 = vunpack.c.l.b16 %v1072
    %v1163 = vunpack.c.h.b16 %v1072
    %v1164 = vunpack.c.l.b16 %v1073
    %v1165 = vunpack.c.h.b16 %v1073
    %v1166 = vunpack.c.l.b16 %v1074
    %v1167 = vunpack.c.h.b16 %v1074
    %v1168 = vunpack.c.l.b16 %v1075
    %v1169 = vunpack.c.h.b16 %v1075
    %v1170 = vunpack.c.l.b16 %v1076
    %v1171 = vunpack.c.h.b16 %v1076
    %v1172 = vunpack.c.l.b16 %v1077
    %v1173 = vunpack.c.h.b16 %v1077
    %v1174 = vpack.c.b16 %v1110, %v1110
    %v1175 = vpack.c.b16 %v1111, %v1111
    %v1176 = vpack.c.b16 %v1112, %v1112
    %v1177 = vpack.c.b16 %v1113, %v1113
    %v1178 = vpack.c.b16 %v1114, %v1114
    %v1179 = vpack.c.b16 %v1115, %v1115
    %v1180 = vpack.c.b16 %v1116, %v1116
    %v1181 = vpack.c.b16 %v1117, %v1117
    %v1182 = vpack.c.b16 %v1118, %v1118
    %v1183 = vpack.c.b16 %v1119, %v1119
    %v1184 = vpack.c.b16 %v1120, %v1120
    %v1185 = vpack.c.b16 %v1121, %v1121
    %v1186 = vpack.c.b16 %v1122, %v1122
    %v1187 = vpack.c.b16 %v1123, %v1123
    %v1188 = vpack.c.b16 %v1124, %v1124
    %v1189 = vpack.c.b16 %v1125, %v1125
    %v1190 = vpack.c.b16 %v1126, %v1126
    %v1191 = vpack.c.b16 %v1127, %v1127
    %v1192 = vpack.c.b16 %v1128, %v1128
    %v1193 = vpack.c.b16 %v1129, %v1129
    %v1194 = vpack.c.b16 %v1130, %v1130
    %v1195 = vpack.c.b16 %v1131, %v1131
    %v1196 = vpack.c.b16 %v1132, %v1132
    %v1197 = vpack.c.b16 %v1133, %v1133
    %v1198 = vpack.c.b16 %v1134, %v1134
    %v1199 = vpack.c.b16 %v1135, %v1135
    %v1200 = vpack.c.b16 %v1136, %v1136
    %v1201 = vpack.c.b16 %v1137, %v1137
    %v1202 = vpack.c.b16 %v1138, %v1138
    %v1203 = vpack.c.b16 %v1139, %v1139
    %v1204 = vpack.c.b16 %v1140, %v1140
    %v1205 = vpack.c.b16 %v1141, %v1141
    %v1206 = vpack.c.b16 %v1142, %v1142
    %v1207 = vpack.c.b16 %v1143, %v1143
    %v1208 = vpack.c.b16 %v1144, %v1144
    %v1209 = vpack.c.b16 %v1145, %v1145
    %v1210 = vpack.c.b16 %v1146, %v1146
    %v1211 = vpack.c.b16 %v1147, %v1147
    %v1212 = vpack.c.b16 %v1148, %v1148
    %v1213 = vpack.c.b16 %v1149, %v1149
    %v1214 = vpack.c.b16 %v1150, %v1150
    %v1215 = vpack.c.b16 %v1151, %v1151
    %v1216 = vpack.c.b16 %v1152, %v1152
    %v1217 = vpack.c.b16 %v1153, %v1153
    %v1218 = vpack.c.b16 %v1154, %v1154
    %v1219 = vpack.c.b16 %v1155, %v1155
    %v1220 = vpack.c.b16 %v1156, %v1156
    %v1221 = vpack.c.b16 %v1157, %v1157
    %v1222 = vpack.c.b16 %v1158, %v1158
    %v1223 = vpack.c.b16 %v1159, %v1159
    %v1224 = vpack.c.b16 %v1160, %v1160
    %v1225 = vpack.c.b16 %v1161, %v1161
    %v1226 = vpack.c.b16 %v1162, %v1162
    %v1227 = vpack.c.b16 %v1163, %v1163
    %v1228 = vpack.c.b16 %v1164, %v1164
    %v1229 = vpack.c.b16 %v1165, %v1165
    %v1230 = vpack.c.b16 %v1166, %v1166
    %v1231 = vpack.c.b16 %v1167, %v1167
    %v1232 = vpack.c.b16 %v1168, %v1168
    %v1233 = vpack.c.b16 %v1169, %v1169
    %v1234 = vpack.c.b16 %v1170, %v1170
    %v1235 = vpack.c.b16 %v1171, %v1171
    %v1236 = vpack.c.b16 %v1172, %v1172
    %v1237 = vpack.c.b16 %v1173, %v1173
    %vm1302 = vcmask 519168
    %1303 = vst.msk [vmem:[#allocation2] sm:$0xf] %vm1302, %v1174
    %1304 = vst.msk [vmem:[#allocation2 + $0x4] sm:$0xf] %vm1302, %v1175
    %1305 = vst.msk [vmem:[#allocation2 + $0x8] sm:$0xf] %vm1302, %v1176
    %1306 = vst.msk [vmem:[#allocation2 + $0xc] sm:$0xf] %vm1302, %v1177
    %1307 = vst.msk [vmem:[#allocation2 + $0x10] sm:$0xf] %vm1302, %v1178
    %1308 = vst.msk [vmem:[#allocation2 + $0x14] sm:$0xf] %vm1302, %v1179
    %1309 = vst.msk [vmem:[#allocation2 + $0x18] sm:$0xf] %vm1302, %v1180
    %1310 = vst.msk [vmem:[#allocation2 + $0x1c] sm:$0xf] %vm1302, %v1181
    %1311 = vst.msk [vmem:[#allocation2 + $0x20] sm:$0xf] %vm1302, %v1182
    %1312 = vst.msk [vmem:[#allocation2 + $0x24] sm:$0xf] %vm1302, %v1183
    %1313 = vst.msk [vmem:[#allocation2 + $0x28] sm:$0xf] %vm1302, %v1184
    %1314 = vst.msk [vmem:[#allocation2 + $0x2c] sm:$0xf] %vm1302, %v1185
    %1315 = vst.msk [vmem:[#allocation2 + $0x30] sm:$0xf] %vm1302, %v1186
    %1316 = vst.msk [vmem:[#allocation2 + $0x34] sm:$0xf] %vm1302, %v1187
    %1317 = vst.msk [vmem:[#allocation2 + $0x38] sm:$0xf] %vm1302, %v1188
    %1318 = vst.msk [vmem:[#allocation2 + $0x3c] sm:$0xf] %vm1302, %v1189
    %1319 = vst.msk [vmem:[#allocation2 + $0x40] sm:$0xf] %vm1302, %v1190
    %1320 = vst.msk [vmem:[#allocation2 + $0x44] sm:$0xf] %vm1302, %v1191
    %1321 = vst.msk [vmem:[#allocation2 + $0x48] sm:$0xf] %vm1302, %v1192
    %1322 = vst.msk [vmem:[#allocation2 + $0x4c] sm:$0xf] %vm1302, %v1193
    %1323 = vst.msk [vmem:[#allocation2 + $0x50] sm:$0xf] %vm1302, %v1194
    %1324 = vst.msk [vmem:[#allocation2 + $0x54] sm:$0xf] %vm1302, %v1195
    %1325 = vst.msk [vmem:[#allocation2 + $0x58] sm:$0xf] %vm1302, %v1196
    %1326 = vst.msk [vmem:[#allocation2 + $0x5c] sm:$0xf] %vm1302, %v1197
    %1327 = vst.msk [vmem:[#allocation2 + $0x60] sm:$0xf] %vm1302, %v1198
    %1328 = vst.msk [vmem:[#allocation2 + $0x64] sm:$0xf] %vm1302, %v1199
    %1329 = vst.msk [vmem:[#allocation2 + $0x68] sm:$0xf] %vm1302, %v1200
    %1330 = vst.msk [vmem:[#allocation2 + $0x6c] sm:$0xf] %vm1302, %v1201
    %1331 = vst.msk [vmem:[#allocation2 + $0x70] sm:$0xf] %vm1302, %v1202
    %1332 = vst.msk [vmem:[#allocation2 + $0x74] sm:$0xf] %vm1302, %v1203
    %1333 = vst.msk [vmem:[#allocation2 + $0x78] sm:$0xf] %vm1302, %v1204
    %1334 = vst.msk [vmem:[#allocation2 + $0x7c] sm:$0xf] %vm1302, %v1205
    %1335 = vst.msk [vmem:[#allocation2 + $0x80] sm:$0xf] %vm1302, %v1206
    %1336 = vst.msk [vmem:[#allocation2 + $0x84] sm:$0xf] %vm1302, %v1207
    %1337 = vst.msk [vmem:[#allocation2 + $0x88] sm:$0xf] %vm1302, %v1208
    %1338 = vst.msk [vmem:[#allocation2 + $0x8c] sm:$0xf] %vm1302, %v1209
    %1339 = vst.msk [vmem:[#allocation2 + $0x90] sm:$0xf] %vm1302, %v1210
    %1340 = vst.msk [vmem:[#allocation2 + $0x94] sm:$0xf] %vm1302, %v1211
    %1341 = vst.msk [vmem:[#allocation2 + $0x98] sm:$0xf] %vm1302, %v1212
    %1342 = vst.msk [vmem:[#allocation2 + $0x9c] sm:$0xf] %vm1302, %v1213
    %1343 = vst.msk [vmem:[#allocation2 + $0xa0] sm:$0xf] %vm1302, %v1214
    %1344 = vst.msk [vmem:[#allocation2 + $0xa4] sm:$0xf] %vm1302, %v1215
    %1345 = vst.msk [vmem:[#allocation2 + $0xa8] sm:$0xf] %vm1302, %v1216
    %1346 = vst.msk [vmem:[#allocation2 + $0xac] sm:$0xf] %vm1302, %v1217
    %1347 = vst.msk [vmem:[#allocation2 + $0xb0] sm:$0xf] %vm1302, %v1218
    %1348 = vst.msk [vmem:[#allocation2 + $0xb4] sm:$0xf] %vm1302, %v1219
    %1349 = vst.msk [vmem:[#allocation2 + $0xb8] sm:$0xf] %vm1302, %v1220
    %1350 = vst.msk [vmem:[#allocation2 + $0xbc] sm:$0xf] %vm1302, %v1221
    %1351 = vst.msk [vmem:[#allocation2 + $0xc0] sm:$0xf] %vm1302, %v1222
    %1352 = vst.msk [vmem:[#allocation2 + $0xc4] sm:$0xf] %vm1302, %v1223
    %1353 = vst.msk [vmem:[#allocation2 + $0xc8] sm:$0xf] %vm1302, %v1224
    %1354 = vst.msk [vmem:[#allocation2 + $0xcc] sm:$0xf] %vm1302, %v1225
    %1355 = vst.msk [vmem:[#allocation2 + $0xd0] sm:$0xf] %vm1302, %v1226
    %1356 = vst.msk [vmem:[#allocation2 + $0xd4] sm:$0xf] %vm1302, %v1227
    %1357 = vst.msk [vmem:[#allocation2 + $0xd8] sm:$0xf] %vm1302, %v1228
    %1358 = vst.msk [vmem:[#allocation2 + $0xdc] sm:$0xf] %vm1302, %v1229
    %1359 = vst.msk [vmem:[#allocation2 + $0xe0] sm:$0xf] %vm1302, %v1230
    %1360 = vst.msk [vmem:[#allocation2 + $0xe4] sm:$0xf] %vm1302, %v1231
    %1361 = vst.msk [vmem:[#allocation2 + $0xe8] sm:$0xf] %vm1302, %v1232
    %1362 = vst.msk [vmem:[#allocation2 + $0xec] sm:$0xf] %vm1302, %v1233
    %1363 = vst.msk [vmem:[#allocation2 + $0xf0] sm:$0xf] %vm1302, %v1234
    %1364 = vst.msk [vmem:[#allocation2 + $0xf4] sm:$0xf] %vm1302, %v1235
    %1365 = vst.msk [vmem:[#allocation2 + $0xf8] sm:$0xf] %vm1302, %v1236
    %1366 = vst.msk [vmem:[#allocation2 + $0xfc] sm:$0xf] %vm1302, %v1237
    // Predicated region
    $region18: #{_stem_conv.1} parent=1 // pred_check
      _
    $region19: #{_stem_conv.1} parent=1 // pred_check_branch
      %1368 = sbr.rel (0) target = $region21
    $region20: #{_stem_conv.1} parent=1 // pred_region
      %s1370 = ssub.s32 4096, 4096
      %1371 = vsyncadd [#allocation3], %s1370
      %s1372 = sshll.u32 [#allocation2], 4
      %s1373 = int_to_ptr.vmem [resolvable:$true] %s1372
      %1378 = dma.vmem_to_hbm [thread:$0]  %s1373, 4096, %s4, [#allocation3], 64, 64, 4
    $region21: #{_stem_conv.1} parent=1 // pred_fallthru
      _
    // Predicated region
    $region22: #{_stem_conv.1} parent=1 // pred_check
      _
    $region23: #{_stem_conv.1} parent=1 // pred_check_branch
      %1380 = sbr.rel (0) target = $region25
    $region24: #{_stem_conv.1} parent=1 // pred_region
      %1381 = dma.done [#allocation3], 4096
    $region25: #{_stem_conv.1} parent=1 // pred_fallthru
      _
    %1382 = vsyncpa [#allocation3], 1

</llo_original>
